<compile_context>
chip_gen: v5e
topology: v5e:2x2
jax: 0.10.0
libtpu: 0.0.40
codegen_flags: <defaults>
</compile_context>

<pallas_src>
import math

import jax
import jax.numpy as jnp
from jax import lax
from jax.experimental import pallas as pl
from jax.experimental.pallas import tpu as pltpu

# ----------------------------- config ---------------------------------------
BATCH = 2
SEQ = 8
HIDDEN = 32
NUM_HEADS = 4
HEAD_DIM = HIDDEN // NUM_HEADS
LN_EPS = 1e-12


def _layer_norm(x, gamma, beta, eps):
    mu = jnp.mean(x, axis=-1, keepdims=True)
    var = jnp.mean((x - mu) ** 2, axis=-1, keepdims=True)   # biased, like torch LayerNorm
    return (x - mu) * lax.rsqrt(var + eps) * gamma + beta


# ----------------------------- kernel ----------------------------------------
def bert_attention_kernel(
    x_ref,      # (1, S, H)   f32   this batch's hidden states (residual source)
    mask_ref,   # (1, 1, S)   f32   this batch's additive key mask
    wq_ref,     # (1, H, HD)  bf16  head-h Q weight (1/sqrt(HD) pre-folded)
    wk_ref,     # (1, H, HD)  bf16
    wv_ref,     # (1, H, HD)  bf16
    bq_ref,     # (1, 1, HD)  f32   (pre-scaled)
    bk_ref,     # (1, 1, HD)  f32
    bv_ref,     # (1, 1, HD)  f32
    wo_ref,     # (1, HD, H)  bf16  head-h rows of the output dense weight
    bo_ref,     # (1, H)      f32
    g_ref,      # (1, H)      f32   LayerNorm gamma
    beta_ref,   # (1, H)      f32   LayerNorm beta
    out_ref,    # (1, S, H)   f32
    acc_ref,    # (S, H)      f32   VMEM scratch: sum over heads of ctx_h @ Wo_h
):
    h = pl.program_id(1)
    n_heads = pl.num_programs(1)

    x = x_ref[0]                                   # (S, H) f32, kept for the residual
    xb = x.astype(jnp.bfloat16)

    # --- per-head Q/K/V projection: 2-D MXU matmuls, contraction over H -------
    q = jnp.dot(xb, wq_ref[0], preferred_element_type=jnp.float32) + bq_ref[0]   # (S, HD)
    k = jnp.dot(xb, wk_ref[0], preferred_element_type=jnp.float32) + bk_ref[0]   # (S, HD)
    v = jnp.dot(xb, wv_ref[0], preferred_element_type=jnp.float32) + bv_ref[0]   # (S, HD)

    # --- attention scores (1/sqrt(HD) already folded into Q) ------------------
    scores = lax.dot_general(
        q.astype(jnp.bfloat16), k.astype(jnp.bfloat16),
        dimension_numbers=(((1,), (1,)), ((), ())),
        preferred_element_type=jnp.float32)                                       # (S, S)
    scores = scores + mask_ref[0]                   # (1, S) additive mask, broadcast

    # --- softmax in f32; reciprocal on the EUP slot ----------------------------
    m = jnp.max(scores, axis=-1, keepdims=True)
    p = jnp.exp(scores - m)
    denom = jnp.sum(p, axis=-1, keepdims=True)
    probs = p * pl.reciprocal(denom, approx=True)

    ctx = jnp.dot(probs.astype(jnp.bfloat16), v.astype(jnp.bfloat16),
                  preferred_element_type=jnp.float32)                             # (S, HD)

    # --- per-head slice of BertSelfOutput.dense; sum over heads = full matmul ---
    head_out = jnp.dot(ctx.astype(jnp.bfloat16), wo_ref[0],
                       preferred_element_type=jnp.float32)                        # (S, H)

    @pl.when(h == 0)
    def _():
        acc_ref[...] = jnp.zeros_like(acc_ref)

    acc_ref[...] += head_out

    # --- finalize on the last head: bias + residual + LayerNorm ----------------
    @pl.when(h == n_heads - 1)
    def _():
        y = acc_ref[...] + bo_ref[...] + x
        y = _layer_norm(y, g_ref[...], beta_ref[...], LN_EPS)
        out_ref[0] = y.astype(out_ref.dtype)


# ----------------------------- wrapper ----------------------------------------
def bert_attention(hidden_states, attention_mask, params):
    """hidden_states: (B, S, H) f32; attention_mask: additive, (B, 1, S)."""
    B, S, H = hidden_states.shape
    NH = NUM_HEADS
    HD = H // NH
    scale = 1.0 / math.sqrt(HD)

    # ---------- host-side (free) weight / layout plumbing ----------------------
    def head_cols(w):                              # (H, H) -> (NH, H, HD): head-h columns
        return jnp.transpose(w.reshape(H, NH, HD), (1, 0, 2))

    wq_h = head_cols(params["wq"] * scale).astype(jnp.bfloat16)   # fold 1/sqrt(HD) into Q
    wk_h = head_cols(params["wk"]).astype(jnp.bfloat16)
    wv_h = head_cols(params["wv"]).astype(jnp.bfloat16)
    bq_h = (params["bq"] * scale).reshape(NH, 1, HD).astype(jnp.float32)
    bk_h = params["bk"].reshape(NH, 1, HD).astype(jnp.float32)
    bv_h = params["bv"].reshape(NH, 1, HD).astype(jnp.float32)
    wo_h = params["wo"].reshape(NH, HD, H).astype(jnp.bfloat16)    # head-h rows of Wo
    bo = params["bo"].reshape(1, H).astype(jnp.float32)
    ln_g = params["ln_g"].reshape(1, H).astype(jnp.float32)
    ln_b = params["ln_b"].reshape(1, H).astype(jnp.float32)

    x3d = hidden_states.astype(jnp.float32)
    mask = attention_mask.reshape(B, 1, S).astype(jnp.float32)

    # per-batch / constant index maps -------------------------------------------
    per_batch3 = lambda b, h: (b, 0, 0)
    per_head3 = lambda b, h: (h, 0, 0)
    const2 = lambda b, h: (0, 0)

    in_specs = [
        pl.BlockSpec((1, S, H), per_batch3),       # x
        pl.BlockSpec((1, 1, S), per_batch3),       # mask
        pl.BlockSpec((1, H, HD), per_head3),       # wq
        pl.BlockSpec((1, H, HD), per_head3),       # wk
        pl.BlockSpec((1, H, HD), per_head3),       # wv
        pl.BlockSpec((1, 1, HD), per_head3),       # bq
        pl.BlockSpec((1, 1, HD), per_head3),       # bk
        pl.BlockSpec((1, 1, HD), per_head3),       # bv
        pl.BlockSpec((1, HD, H), per_head3),       # wo
        pl.BlockSpec((1, H), const2),              # bo    (resident, DMA'd once)
        pl.BlockSpec((1, H), const2),              # gamma (resident)
        pl.BlockSpec((1, H), const2),              # beta  (resident)
    ]
    out_spec = pl.BlockSpec((1, S, H), per_batch3)  # resident across the head axis

    # advisory cost estimate (flops of the 5 matmuls + exp count)
    flops = B * NH * (8 * S * H * HD + 4 * S * S * HD)
    transcendentals = B * NH * S * S
    bytes_accessed = (2 * B * S * H * 4) + (B * S * 4) + (4 * H * H * 2) + (7 * H * 4)

    out = pl.pallas_call(
        bert_attention_kernel,
        out_shape=jax.ShapeDtypeStruct((B, S, H), hidden_states.dtype),
        grid_spec=pltpu.PrefetchScalarGridSpec(
            num_scalar_prefetch=0,
            grid=(B, NH),                                  # batch (parallel) x heads (reduction)
            in_specs=in_specs,
            out_specs=out_spec,
            scratch_shapes=[pltpu.VMEM((S, H), jnp.float32)],
        ),
        compiler_params=pltpu.CompilerParams(
            dimension_semantics=("parallel", "arbitrary"),
            vmem_limit_bytes=32 * 1024 * 1024,             # explicit, fits all generations
        ),
        cost_estimate=pl.CostEstimate(
            flops=flops, transcendentals=transcendentals, bytes_accessed=bytes_accessed),
    )(x3d, mask, wq_h, wk_h, wv_h, bq_h, bk_h, bv_h, wo_h, bo, ln_g, ln_b)
    return out


# --------------------- plain-JAX f32 reference (for checking) ------------------
def bert_attention_ref(x, mask, p):
    B, S, H = x.shape
    NH, HD = NUM_HEADS, H // NUM_HEADS
    q = x @ p["wq"] + p["bq"]
    k = x @ p["wk"] + p["bk"]
    v = x @ p["wv"] + p["bv"]

    def split(t):                                   # (B, S, H) -> (B, NH, S, HD)
        return t.reshape(B, S, NH, HD).transpose(0, 2, 1, 3)

    qh, kh, vh = split(q), split(k), split(v)
    scores = jnp.einsum("bnqd,bnkd->bnqk", qh, kh) / math.sqrt(HD)
    scores = scores + mask[:, None, :, :]           # (B,1,1,S) broadcast
    probs = jax.nn.softmax(scores, axis=-1)
    ctx = jnp.einsum("bnqk,bnkd->bnqd", probs, vh)
    ctx = ctx.transpose(0, 2, 1, 3).reshape(B, S, H)
    return _layer_norm(ctx @ p["wo"] + p["bo"] + x, p["ln_g"], p["ln_b"], LN_EPS)


def init_params(key):
    ks = jax.random.split(key, 8)
    std = 0.02
    H = HIDDEN
    return {
        "wq": jax.random.normal(ks[0], (H, H), jnp.float32) * std,
        "bq": jax.random.normal(ks[1], (H,), jnp.float32) * std,
        "wk": jax.random.normal(ks[2], (H, H), jnp.float32) * std,
        "bk": jax.random.normal(ks[3], (H,), jnp.float32) * std,
        "wv": jax.random.normal(ks[4], (H, H), jnp.float32) * std,
        "bv": jax.random.normal(ks[5], (H,), jnp.float32) * std,
        "wo": jax.random.normal(ks[6], (H, H), jnp.float32) * std,
        "bo": jax.random.normal(ks[7], (H,), jnp.float32) * std,
        "ln_g": jnp.ones((H,), jnp.float32),
        "ln_b": jnp.zeros((H,), jnp.float32),
    }


if __name__ == "__main__":
    key = jax.random.PRNGKey(0)
    k_x, k_p = jax.random.split(key)

    hidden_states = jax.random.normal(k_x, (BATCH, SEQ, HIDDEN), jnp.float32)
    # additive HF-style mask: last 2 tokens of batch 1 masked out
    attention_mask = jnp.zeros((BATCH, 1, SEQ), jnp.float32)
    attention_mask = attention_mask.at[1, 0, -2:].set(-10000.0)

    params = init_params(k_p)

    out = bert_attention(hidden_states, attention_mask, params)
    out = jax.block_until_ready(out)

    ref = bert_attention_ref(hidden_states, attention_mask, params)
    assert out.shape == (BATCH, SEQ, HIDDEN)
    # bf16 matmul operands (f32 accumulation) + approx reciprocal -> loosened tolerance
    assert jnp.allclose(out, ref, atol=1e-2, rtol=1e-2), "mismatch vs reference"

    print("KERNEL_OK")
</pallas_src>

<mosaic_0001>
module attributes {stable_mosaic.version = 11 : i64} {
  func.func @bert_attention_kernel(%arg0: i32, %arg1: i32, %arg2: memref<1x8x32xf32, #tpu.memory_space<vmem>>, %arg3: memref<1x1x8xf32, #tpu.memory_space<vmem>>, %arg4: memref<1x32x8xbf16, #tpu.memory_space<vmem>>, %arg5: memref<1x32x8xbf16, #tpu.memory_space<vmem>>, %arg6: memref<1x32x8xbf16, #tpu.memory_space<vmem>>, %arg7: memref<1x1x8xf32, #tpu.memory_space<vmem>>, %arg8: memref<1x1x8xf32, #tpu.memory_space<vmem>>, %arg9: memref<1x1x8xf32, #tpu.memory_space<vmem>>, %arg10: memref<1x8x32xbf16, #tpu.memory_space<vmem>>, %arg11: memref<1x32xf32, #tpu.memory_space<vmem>>, %arg12: memref<1x32xf32, #tpu.memory_space<vmem>>, %arg13: memref<1x32xf32, #tpu.memory_space<vmem>>, %arg14: memref<1x8x32xf32, #tpu.memory_space<vmem>>, %arg15: memref<8x32xf32, #tpu.memory_space<vmem>>) attributes {dimension_semantics = [#tpu.dimension_semantics<parallel>, #tpu.dimension_semantics<arbitrary>], iteration_bounds = array<i64: 2, 4>, scalar_prefetch = 0 : i64, scratch_operands = 1 : i64, tpu.core_type = #tpu.core_type<tc>, window_params = [{transform_indices = @transform_0, window_bounds = array<i64: 1, 8, 32>}, {transform_indices = @transform_1, window_bounds = array<i64: 1, 1, 8>}, {transform_indices = @transform_2, window_bounds = array<i64: 1, 32, 8>}, {transform_indices = @transform_3, window_bounds = array<i64: 1, 32, 8>}, {transform_indices = @transform_4, window_bounds = array<i64: 1, 32, 8>}, {transform_indices = @transform_5, window_bounds = array<i64: 1, 1, 8>}, {transform_indices = @transform_6, window_bounds = array<i64: 1, 1, 8>}, {transform_indices = @transform_7, window_bounds = array<i64: 1, 1, 8>}, {transform_indices = @transform_8, window_bounds = array<i64: 1, 8, 32>}, {pipeline_mode = #tpu.pipeline_mode<synchronous>, transform_indices = @transform_9, window_bounds = array<i64: 1, 32>}, {pipeline_mode = #tpu.pipeline_mode<synchronous>, transform_indices = @transform_10, window_bounds = array<i64: 1, 32>}, {pipeline_mode = #tpu.pipeline_mode<synchronous>, transform_indices = @transform_11, window_bounds = array<i64: 1, 32>}, {transform_indices = @transform_12, window_bounds = array<i64: 1, 8, 32>}]} {
    %c0 = arith.constant 0 : index
    %c0_0 = arith.constant 0 : index
    %c0_1 = arith.constant 0 : index
    %0 = vector.load %arg2[%c0, %c0_0, %c0_1] : memref<1x8x32xf32, #tpu.memory_space<vmem>>, vector<1x8x32xf32>
    %1 = vector.shape_cast %0 : vector<1x8x32xf32> to vector<8x32xf32>
    %2 = arith.truncf %1 : vector<8x32xf32> to vector<8x32xbf16>
    %c0_2 = arith.constant 0 : index
    %c0_3 = arith.constant 0 : index
    %c0_4 = arith.constant 0 : index
    %3 = vector.load %arg4[%c0_2, %c0_3, %c0_4] : memref<1x32x8xbf16, #tpu.memory_space<vmem>>, vector<1x32x8xbf16>
    %4 = vector.shape_cast %3 : vector<1x32x8xbf16> to vector<32x8xbf16>
    %cst = arith.constant dense<0.000000e+00> : vector<8x8xf32>
    %5 = tpu.matmul %2, %4, %cst {dimension_numbers = #tpu.dot_dimension_numbers<[1], [0], [0], [1], [0, 0, 1, 1], [], []>} : vector<8x32xbf16>, vector<32x8xbf16>, vector<8x8xf32> -> vector<8x8xf32>
    %c0_5 = arith.constant 0 : index
    %c0_6 = arith.constant 0 : index
    %c0_7 = arith.constant 0 : index
    %6 = vector.load %arg7[%c0_5, %c0_6, %c0_7] : memref<1x1x8xf32, #tpu.memory_space<vmem>>, vector<1x1x8xf32>
    %7 = vector.shape_cast %6 : vector<1x1x8xf32> to vector<1x8xf32>
    %8 = vector.broadcast %7 : vector<1x8xf32> to vector<8x8xf32>
    %9 = arith.addf %5, %8 : vector<8x8xf32>
    %c0_8 = arith.constant 0 : index
    %c0_9 = arith.constant 0 : index
    %c0_10 = arith.constant 0 : index
    %10 = vector.load %arg5[%c0_8, %c0_9, %c0_10] : memref<1x32x8xbf16, #tpu.memory_space<vmem>>, vector<1x32x8xbf16>
    %11 = vector.shape_cast %10 : vector<1x32x8xbf16> to vector<32x8xbf16>
    %cst_11 = arith.constant dense<0.000000e+00> : vector<8x8xf32>
    %12 = tpu.matmul %2, %11, %cst_11 {dimension_numbers = #tpu.dot_dimension_numbers<[1], [0], [0], [1], [0, 0, 1, 1], [], []>} : vector<8x32xbf16>, vector<32x8xbf16>, vector<8x8xf32> -> vector<8x8xf32>
    %c0_12 = arith.constant 0 : index
    %c0_13 = arith.constant 0 : index
    %c0_14 = arith.constant 0 : index
    %13 = vector.load %arg8[%c0_12, %c0_13, %c0_14] : memref<1x1x8xf32, #tpu.memory_space<vmem>>, vector<1x1x8xf32>
    %14 = vector.shape_cast %13 : vector<1x1x8xf32> to vector<1x8xf32>
    %15 = vector.broadcast %14 : vector<1x8xf32> to vector<8x8xf32>
    %16 = arith.addf %12, %15 : vector<8x8xf32>
    %c0_15 = arith.constant 0 : index
    %c0_16 = arith.constant 0 : index
    %c0_17 = arith.constant 0 : index
    %17 = vector.load %arg6[%c0_15, %c0_16, %c0_17] : memref<1x32x8xbf16, #tpu.memory_space<vmem>>, vector<1x32x8xbf16>
    %18 = vector.shape_cast %17 : vector<1x32x8xbf16> to vector<32x8xbf16>
    %cst_18 = arith.constant dense<0.000000e+00> : vector<8x8xf32>
    %19 = tpu.matmul %2, %18, %cst_18 {dimension_numbers = #tpu.dot_dimension_numbers<[1], [0], [0], [1], [0, 0, 1, 1], [], []>} : vector<8x32xbf16>, vector<32x8xbf16>, vector<8x8xf32> -> vector<8x8xf32>
    %c0_19 = arith.constant 0 : index
    %c0_20 = arith.constant 0 : index
    %c0_21 = arith.constant 0 : index
    %20 = vector.load %arg9[%c0_19, %c0_20, %c0_21] : memref<1x1x8xf32, #tpu.memory_space<vmem>>, vector<1x1x8xf32>
    %21 = vector.shape_cast %20 : vector<1x1x8xf32> to vector<1x8xf32>
    %22 = vector.broadcast %21 : vector<1x8xf32> to vector<8x8xf32>
    %23 = arith.addf %19, %22 : vector<8x8xf32>
    %24 = arith.truncf %9 : vector<8x8xf32> to vector<8x8xbf16>
    %25 = arith.truncf %16 : vector<8x8xf32> to vector<8x8xbf16>
    %cst_22 = arith.constant dense<0.000000e+00> : vector<8x8xf32>
    %26 = tpu.matmul %24, %25, %cst_22 {dimension_numbers = #tpu.dot_dimension_numbers<[1], [1], [0], [0], [0, 0, 1, 0], [], []>} : vector<8x8xbf16>, vector<8x8xbf16>, vector<8x8xf32> -> vector<8x8xf32>
    %c0_23 = arith.constant 0 : index
    %c0_24 = arith.constant 0 : index
    %c0_25 = arith.constant 0 : index
    %27 = vector.load %arg3[%c0_23, %c0_24, %c0_25] : memref<1x1x8xf32, #tpu.memory_space<vmem>>, vector<1x1x8xf32>
    %28 = vector.shape_cast %27 : vector<1x1x8xf32> to vector<1x8xf32>
    %29 = vector.broadcast %28 : vector<1x8xf32> to vector<8x8xf32>
    %30 = arith.addf %26, %29 : vector<8x8xf32>
    %cst_26 = arith.constant dense<0xFF800000> : vector<8xf32>
    %31 = vector.multi_reduction <maximumf>, %30, %cst_26 [1] : vector<8x8xf32> to vector<8xf32>
    %32 = vector.shape_cast %31 : vector<8xf32> to vector<8x1xf32>
    %33 = vector.broadcast %32 : vector<8x1xf32> to vector<8x8xf32>
    %34 = arith.subf %30, %33 : vector<8x8xf32>
    %35 = math.exp %34 : vector<8x8xf32>
    %cst_27 = arith.constant dense<0.000000e+00> : vector<8xf32>
    %36 = vector.multi_reduction <add>, %35, %cst_27 [1] : vector<8x8xf32> to vector<8xf32>
    %37 = vector.shape_cast %36 : vector<8xf32> to vector<8x1xf32>
    %38 = tpu.reciprocal %37 {approx = true} : vector<8x1xf32> -> vector<8x1xf32>
    %39 = vector.broadcast %38 : vector<8x1xf32> to vector<8x8xf32>
    %40 = arith.mulf %35, %39 : vector<8x8xf32>
    %41 = arith.truncf %40 : vector<8x8xf32> to vector<8x8xbf16>
    %42 = arith.truncf %23 : vector<8x8xf32> to vector<8x8xbf16>
    %cst_28 = arith.constant dense<0.000000e+00> : vector<8x8xf32>
    %43 = tpu.matmul %41, %42, %cst_28 {dimension_numbers = #tpu.dot_dimension_numbers<[1], [0], [0], [1], [0, 0, 1, 1], [], []>} : vector<8x8xbf16>, vector<8x8xbf16>, vector<8x8xf32> -> vector<8x8xf32>
    %44 = arith.truncf %43 : vector<8x8xf32> to vector<8x8xbf16>
    %c0_29 = arith.constant 0 : index
    %c0_30 = arith.constant 0 : index
    %c0_31 = arith.constant 0 : index
    %45 = vector.load %arg10[%c0_29, %c0_30, %c0_31] : memref<1x8x32xbf16, #tpu.memory_space<vmem>>, vector<1x8x32xbf16>
    %46 = vector.shape_cast %45 : vector<1x8x32xbf16> to vector<8x32xbf16>
    %cst_32 = arith.constant dense<0.000000e+00> : vector<8x32xf32>
    %47 = tpu.matmul %44, %46, %cst_32 {dimension_numbers = #tpu.dot_dimension_numbers<[1], [0], [0], [1], [0, 0, 1, 1], [], []>} : vector<8x8xbf16>, vector<8x32xbf16>, vector<8x32xf32> -> vector<8x32xf32>
    %c0_i32 = arith.constant 0 : i32
    %48 = arith.cmpi eq, %arg1, %c0_i32 : i32
    %49 = arith.extui %48 : i1 to i32
    %c0_i32_33 = arith.constant 0 : i32
    %50 = arith.cmpi ne, %49, %c0_i32_33 : i32
    scf.if %50 {
      %cst_39 = arith.constant 0.000000e+00 : f32
      %57 = vector.broadcast %cst_39 : f32 to vector<8x32xf32>
      %c0_40 = arith.constant 0 : index
      %c0_41 = arith.constant 0 : index
      %58 = vector.load %arg15[%c0_40, %c0_41] : memref<8x32xf32, #tpu.memory_space<vmem>>, vector<8x32xf32>
      tpu.vector_store %arg15[%c0_40, %c0_41], %57 {strides = array<i32>} : memref<8x32xf32, #tpu.memory_space<vmem>>, vector<8x32xf32>,
    } else {
    }
    %c0_34 = arith.constant 0 : index
    %c0_35 = arith.constant 0 : index
    %51 = vector.load %arg15[%c0_34, %c0_35] : memref<8x32xf32, #tpu.memory_space<vmem>>, vector<8x32xf32>
    %52 = arith.addf %51, %47 : vector<8x32xf32>
    %c0_36 = arith.constant 0 : index
    %c0_37 = arith.constant 0 : index
    %53 = vector.load %arg15[%c0_36, %c0_37] : memref<8x32xf32, #tpu.memory_space<vmem>>, vector<8x32xf32>
    tpu.vector_store %arg15[%c0_36, %c0_37], %52 {strides = array<i32>} : memref<8x32xf32, #tpu.memory_space<vmem>>, vector<8x32xf32>,
    %c3_i32 = arith.constant 3 : i32
    %54 = arith.cmpi eq, %arg1, %c3_i32 : i32
    %55 = arith.extui %54 : i1 to i32
    %c0_i32_38 = arith.constant 0 : i32
    %56 = arith.cmpi ne, %55, %c0_i32_38 : i32
    scf.if %56 {
      %c0_39 = arith.constant 0 : index
      %c0_40 = arith.constant 0 : index
      %57 = vector.load %arg15[%c0_39, %c0_40] : memref<8x32xf32, #tpu.memory_space<vmem>>, vector<8x32xf32>
      %c0_41 = arith.constant 0 : index
      %c0_42 = arith.constant 0 : index
      %58 = vector.load %arg11[%c0_41, %c0_42] : memref<1x32xf32, #tpu.memory_space<vmem>>, vector<1x32xf32>
      %59 = vector.broadcast %58 : vector<1x32xf32> to vector<8x32xf32>
      %60 = arith.addf %57, %59 : vector<8x32xf32>
      %61 = arith.addf %60, %1 : vector<8x32xf32>
      %c0_43 = arith.constant 0 : index
      %c0_44 = arith.constant 0 : index
      %62 = vector.load %arg12[%c0_43, %c0_44] : memref<1x32xf32, #tpu.memory_space<vmem>>, vector<1x32xf32>
      %c0_45 = arith.constant 0 : index
      %c0_46 = arith.constant 0 : index
      %63 = vector.load %arg13[%c0_45, %c0_46] : memref<1x32xf32, #tpu.memory_space<vmem>>, vector<1x32xf32>
      %cst_47 = arith.constant dense<0.000000e+00> : vector<8xf32>
      %64 = vector.multi_reduction <add>, %61, %cst_47 [1] : vector<8x32xf32> to vector<8xf32>
      %65 = vector.shape_cast %64 : vector<8xf32> to vector<8x1xf32>
      %cst_48 = arith.constant 3.200000e+01 : f32
      %66 = vector.broadcast %cst_48 : f32 to vector<8x1xf32>
      %67 = arith.divf %65, %66 : vector<8x1xf32>
      %68 = vector.broadcast %67 : vector<8x1xf32> to vector<8x32xf32>
      %69 = arith.subf %61, %68 : vector<8x32xf32>
      %70 = arith.mulf %69, %69 : vector<8x32xf32>
      %cst_49 = arith.constant dense<0.000000e+00> : vector<8xf32>
      %71 = vector.multi_reduction <add>, %70, %cst_49 [1] : vector<8x32xf32> to vector<8xf32>
      %72 = vector.shape_cast %71 : vector<8xf32> to vector<8x1xf32>
      %cst_50 = arith.constant 3.200000e+01 : f32
      %73 = vector.broadcast %cst_50 : f32 to vector<8x1xf32>
      %74 = arith.divf %72, %73 : vector<8x1xf32>
      %75 = vector.broadcast %67 : vector<8x1xf32> to vector<8x32xf32>
      %76 = arith.subf %61, %75 : vector<8x32xf32>
      %cst_51 = arith.constant 9.99999996E-13 : f32
      %77 = vector.broadcast %cst_51 : f32 to vector<8x1xf32>
      %78 = arith.addf %74, %77 : vector<8x1xf32>
      %79 = math.rsqrt %78 : vector<8x1xf32>
      %80 = vector.broadcast %79 : vector<8x1xf32> to vector<8x32xf32>
      %81 = arith.mulf %76, %80 : vector<8x32xf32>
      %82 = vector.broadcast %62 : vector<1x32xf32> to vector<8x32xf32>
      %83 = arith.mulf %81, %82 : vector<8x32xf32>
      %84 = vector.broadcast %63 : vector<1x32xf32> to vector<8x32xf32>
      %85 = arith.addf %83, %84 : vector<8x32xf32>
      %c0_52 = arith.constant 0 : index
      %c0_53 = arith.constant 0 : index
      %c0_54 = arith.constant 0 : index
      %86 = vector.load %arg14[%c0_52, %c0_53, %c0_54] : memref<1x8x32xf32, #tpu.memory_space<vmem>>, vector<1x8x32xf32>
      %87 = vector.shape_cast %86 : vector<1x8x32xf32> to vector<8x32xf32>
      %88 = vector.shape_cast %85 : vector<8x32xf32> to vector<1x8x32xf32>
      tpu.vector_store %arg14[%c0_52, %c0_53, %c0_54], %88 {strides = array<i32>} : memref<1x8x32xf32, #tpu.memory_space<vmem>>, vector<1x8x32xf32>,
    } else {
    }
    return
  }
  func.func @transform_0(%arg0: i32, %arg1: i32) -> (i32, i32, i32) {
    %c0_i32 = arith.constant 0 : i32
    %c0_i32_0 = arith.constant 0 : i32
    %c0_i32_1 = arith.constant 0 : i32
    return %arg0, %c0_i32, %c0_i32_0 : i32, i32, i32
  }
  func.func @transform_1(%arg0: i32, %arg1: i32) -> (i32, i32, i32) {
    %c0_i32 = arith.constant 0 : i32
    %c0_i32_0 = arith.constant 0 : i32
    %c0_i32_1 = arith.constant 0 : i32
    return %arg0, %c0_i32, %c0_i32_0 : i32, i32, i32
  }
  func.func @transform_2(%arg0: i32, %arg1: i32) -> (i32, i32, i32) {
    %c0_i32 = arith.constant 0 : i32
    %c0_i32_0 = arith.constant 0 : i32
    %c0_i32_1 = arith.constant 0 : i32
    return %arg1, %c0_i32, %c0_i32_0 : i32, i32, i32
  }
  func.func @transform_3(%arg0: i32, %arg1: i32) -> (i32, i32, i32) {
    %c0_i32 = arith.constant 0 : i32
    %c0_i32_0 = arith.constant 0 : i32
    %c0_i32_1 = arith.constant 0 : i32
    return %arg1, %c0_i32, %c0_i32_0 : i32, i32, i32
  }
  func.func @transform_4(%arg0: i32, %arg1: i32) -> (i32, i32, i32) {
    %c0_i32 = arith.constant 0 : i32
    %c0_i32_0 = arith.constant 0 : i32
    %c0_i32_1 = arith.constant 0 : i32
    return %arg1, %c0_i32, %c0_i32_0 : i32, i32, i32
  }
  func.func @transform_5(%arg0: i32, %arg1: i32) -> (i32, i32, i32) {
    %c0_i32 = arith.constant 0 : i32
    %c0_i32_0 = arith.constant 0 : i32
    %c0_i32_1 = arith.constant 0 : i32
    return %arg1, %c0_i32, %c0_i32_0 : i32, i32, i32
  }
  func.func @transform_6(%arg0: i32, %arg1: i32) -> (i32, i32, i32) {
    %c0_i32 = arith.constant 0 : i32
    %c0_i32_0 = arith.constant 0 : i32
    %c0_i32_1 = arith.constant 0 : i32
    return %arg1, %c0_i32, %c0_i32_0 : i32, i32, i32
  }
  func.func @transform_7(%arg0: i32, %arg1: i32) -> (i32, i32, i32) {
    %c0_i32 = arith.constant 0 : i32
    %c0_i32_0 = arith.constant 0 : i32
    %c0_i32_1 = arith.constant 0 : i32
    return %arg1, %c0_i32, %c0_i32_0 : i32, i32, i32
  }
  func.func @transform_8(%arg0: i32, %arg1: i32) -> (i32, i32, i32) {
    %c0_i32 = arith.constant 0 : i32
    %c0_i32_0 = arith.constant 0 : i32
    %c0_i32_1 = arith.constant 0 : i32
    return %arg1, %c0_i32, %c0_i32_0 : i32, i32, i32
  }
  func.func @transform_9(%arg0: i32, %arg1: i32) -> (i32, i32) {
    %c0_i32 = arith.constant 0 : i32
    %c0_i32_0 = arith.constant 0 : i32
    %c0_i32_1 = arith.constant 0 : i32
    return %c0_i32, %c0_i32_0 : i32, i32
  }
  func.func @transform_10(%arg0: i32, %arg1: i32) -> (i32, i32) {
    %c0_i32 = arith.constant 0 : i32
    %c0_i32_0 = arith.constant 0 : i32
    %c0_i32_1 = arith.constant 0 : i32
    return %c0_i32, %c0_i32_0 : i32, i32
  }
  func.func @transform_11(%arg0: i32, %arg1: i32) -> (i32, i32) {
    %c0_i32 = arith.constant 0 : i32
    %c0_i32_0 = arith.constant 0 : i32
    %c0_i32_1 = arith.constant 0 : i32
    return %c0_i32, %c0_i32_0 : i32, i32
  }
  func.func @transform_12(%arg0: i32, %arg1: i32) -> (i32, i32, i32) {
    %c0_i32 = arith.constant 0 : i32
    %c0_i32_0 = arith.constant 0 : i32
    %c0_i32_1 = arith.constant 0 : i32
    return %arg0, %c0_i32, %c0_i32_0 : i32, i32, i32
  }
}

</mosaic_0001>

<llo_original>
// kernel: tpu_custom_call.1
$region0: #{tpu_custom_call.1}
  #allocation0 [shape = 'u32[]', space=smem, size = 0x4, offset = 0x4, fixed_abs, tag = 'smem constant byte address 0x4 - core index']
  #allocation1 [shape = 'u32[72,128]{1,0:T(1,128)}', space=vmem, size = 0x9000, scoped, tag = 'internal scratch']
  #allocation2 [shape = 'f32[8,32]{1,0:T(8,128)}', space=vmem, size = 0x1000, scoped, tag = 'scratch operand']
  %s0 = inlined_call_operand.vmem [shape: f32[2,8,32], index: 0, kind: input, shape index: {}]
  %s1 = inlined_call_operand.vmem [shape: f32[2,1,8], index: 1, kind: input, shape index: {}]
  %s2 = inlined_call_operand.vmem [shape: bf16[4,32,8], index: 2, kind: input, shape index: {}]
  %s3 = inlined_call_operand.vmem [shape: bf16[4,32,8], index: 3, kind: input, shape index: {}]
  %s4 = inlined_call_operand.vmem [shape: bf16[4,32,8], index: 4, kind: input, shape index: {}]
  %s5 = inlined_call_operand.vmem [shape: f32[4,1,8], index: 5, kind: input, shape index: {}]
  %s6 = inlined_call_operand.vmem [shape: f32[4,1,8], index: 6, kind: input, shape index: {}]
  %s7 = inlined_call_operand.vmem [shape: f32[4,1,8], index: 7, kind: input, shape index: {}]
  %s8 = inlined_call_operand.vmem [shape: bf16[4,8,32], index: 8, kind: input, shape index: {}]
  %s9 = inlined_call_operand.vmem [shape: f32[1,32], index: 9, kind: input, shape index: {}]
  %s10 = inlined_call_operand.vmem [shape: f32[1,32], index: 10, kind: input, shape index: {}]
  %s11 = inlined_call_operand.vmem [shape: f32[1,32], index: 11, kind: input, shape index: {}]
  %s12 = inlined_call_operand.hbm [shape: f32[2,8,32], index: 12, kind: output, shape index: {}]
  %s13 = sld [smem:[#allocation0]]
  $region89: #{tpu_custom_call.1} parent=0
    _
  %s15 = ssub.s32 1, %s13
  %s16 = scalar_select 0, %s15, %s13
  $region1: #{tpu_custom_call.1} parent=0
    #allocation3 [shape = 'u8[8192]{0}', space=vmem, size = 0x2000, scoped, tag = 'output window, operand 0']
    #allocation4 [shape = 's32[2]{0}', space=sflag, size = 0x8, scoped, tag = 'scoped memory for tpu_custom_call.1']
    %17 = vsyncpa [#allocation4], 0
    %s18 = scalar_lea.sflag [#allocation4], 1
    %19 = vsyncpa %s18, 0
    loop: start=0, step=1, limit=10
    $region2: #{tpu_custom_call.1} parent=1 // loop_pre_header
      _
    $region3: #{tpu_custom_call.1} parent=1 // loop_header
      %s21 = sphi 0, %s25
      %p22 = scmp.ge.s32.totalorder %s21, 10
      %s28 = sphi 0, %s40
      %s29 = sphi 0, %s36
      %s30 = sphi 0, %s28
      %s31 = sphi 0, %s29
      %s32 = sphi 0, %s30
      %s33 = sphi 0, %s31
      %s43 = sphi 0, %s45
      %s46 = sphi 0, %s43
      %s47 = sphi 0, %s46
      %s63 = sphi 0, %s47
      %s69 = sphi 0, %s71
      %s72 = sphi 0, %s69
      %s73 = sphi 0, %s72
      %s89 = sphi 0, %s73
      %s95 = sphi 0, %s97
      %s98 = sphi 0, %s95
      %s99 = sphi 0, %s98
      %s115 = sphi 0, %s99
      %s121 = sphi 0, %s123
      %s124 = sphi 0, %s121
      %s125 = sphi 0, %s124
      %s141 = sphi 0, %s125
      %s147 = sphi 0, %s149
      %s150 = sphi 0, %s147
      %s151 = sphi 0, %s150
      %s167 = sphi 0, %s151
      %s173 = sphi 0, %s175
      %s176 = sphi 0, %s173
      %s177 = sphi 0, %s176
      %s193 = sphi 0, %s177
      %s199 = sphi 0, %s201
      %s202 = sphi 0, %s199
      %s203 = sphi 0, %s202
      %s219 = sphi 0, %s203
      %s225 = sphi 0, %s227
      %s228 = sphi 0, %s225
      %s229 = sphi 0, %s228
      %s245 = sphi 0, %s229
      %s251 = sphi 0, %s253
      %s254 = sphi 0, %s251
      %s255 = sphi 0, %s254
      %s271 = sphi 0, %s255
      %s275 = sphi 0, %s275
      %s277 = sphi 0, %s275
      %s278 = sphi 0, %s277
      %s292 = sphi 0, %s278
      %s296 = sphi 0, %s296
      %s298 = sphi 0, %s296
      %s299 = sphi 0, %s298
      %s313 = sphi 0, %s299
      %s317 = sphi 0, %s317
      %s319 = sphi 0, %s317
      %s320 = sphi 0, %s319
      %s334 = sphi 0, %s320
      %s340 = sphi 0, %s342
      %s343 = sphi 0, %s340
      %s344 = sphi 0, %s343
      %s360 = sphi 0, %s344
    $region4: #{tpu_custom_call.1} parent=1 // loop_header_branch
      %24 = sbr.rel (%p22) target = $region8
    $region5: #{tpu_custom_call.1} parent=1 // loop_body
      %s26 = ssub.s32 %s21, 1
      %s27 = ssub.s32 %s21, 2
      %s34 = sadd.s32 1, %s29
      %p35 = scmp.ge.s32.totalorder %s34, 4
      %s36 = scalar_select %p35, 0, %s34
      %s37 = sadd.s32 1, %s28
      %s38 = scalar_select %p35, %s37, %s28
      %p39 = scmp.ge.s32.totalorder %s38, 2
      %s40 = scalar_select %p39, 0, %s38
      %s41 = ssub.s32 %s28, %s40
      %p42 = scmp.eq.s32.totalorder %s41, 0
      %s44 = sadd.s32 %s43, 1
      %s45 = scalar_select %p42, %s43, %s44
      %p48 = pneg %p42
      %p49 = scmp.eq.s32.totalorder %s21, 7
      %p50 = por %p48, %p49
      %p51 = scmp.ne.s32.totalorder %s43, %s46
      %p52 = scmp.eq.s32.totalorder %s21, 0
      %p53 = por %p51, %p52
      %p54 = scmp.ne.s32.totalorder %s43, %s46
      %p55 = scmp.eq.s32.totalorder %s26, 7
      %p56 = por %p54, %p55
      %p57 = scmp.ne.s32.totalorder %s46, %s47
      %p58 = scmp.eq.s32.totalorder %s26, 0
      %p59 = por %p57, %p58
      %p60 = scmp.ne.s32.totalorder %s46, %s47
      %p61 = scmp.eq.s32.totalorder %s27, 7
      %p62 = por %p60, %p61
      %p64 = scmp.ne.s32.totalorder %s47, %s63
      %p65 = scmp.eq.s32.totalorder %s27, 0
      %p66 = por %p64, %p65
      %s67 = ssub.s32 %s28, %s40
      %p68 = scmp.eq.s32.totalorder %s67, 0
      %s70 = sadd.s32 %s69, 1
      %s71 = scalar_select %p68, %s69, %s70
      %p74 = pneg %p68
      %p75 = scmp.eq.s32.totalorder %s21, 7
      %p76 = por %p74, %p75
      %p77 = scmp.ne.s32.totalorder %s69, %s72
      %p78 = scmp.eq.s32.totalorder %s21, 0
      %p79 = por %p77, %p78
      %p80 = scmp.ne.s32.totalorder %s69, %s72
      %p81 = scmp.eq.s32.totalorder %s26, 7
      %p82 = por %p80, %p81
      %p83 = scmp.ne.s32.totalorder %s72, %s73
      %p84 = scmp.eq.s32.totalorder %s26, 0
      %p85 = por %p83, %p84
      %p86 = scmp.ne.s32.totalorder %s72, %s73
      %p87 = scmp.eq.s32.totalorder %s27, 7
      %p88 = por %p86, %p87
      %p90 = scmp.ne.s32.totalorder %s73, %s89
      %p91 = scmp.eq.s32.totalorder %s27, 0
      %p92 = por %p90, %p91
      %s93 = ssub.s32 %s29, %s36
      %p94 = scmp.eq.s32.totalorder %s93, 0
      %s96 = sadd.s32 %s95, 1
      %s97 = scalar_select %p94, %s95, %s96
      %p100 = pneg %p94
      %p101 = scmp.eq.s32.totalorder %s21, 7
      %p102 = por %p100, %p101
      %p103 = scmp.ne.s32.totalorder %s95, %s98
      %p104 = scmp.eq.s32.totalorder %s21, 0
      %p105 = por %p103, %p104
      %p106 = scmp.ne.s32.totalorder %s95, %s98
      %p107 = scmp.eq.s32.totalorder %s26, 7
      %p108 = por %p106, %p107
      %p109 = scmp.ne.s32.totalorder %s98, %s99
      %p110 = scmp.eq.s32.totalorder %s26, 0
      %p111 = por %p109, %p110
      %p112 = scmp.ne.s32.totalorder %s98, %s99
      %p113 = scmp.eq.s32.totalorder %s27, 7
      %p114 = por %p112, %p113
      %p116 = scmp.ne.s32.totalorder %s99, %s115
      %p117 = scmp.eq.s32.totalorder %s27, 0
      %p118 = por %p116, %p117
      %s119 = ssub.s32 %s29, %s36
      %p120 = scmp.eq.s32.totalorder %s119, 0
      %s122 = sadd.s32 %s121, 1
      %s123 = scalar_select %p120, %s121, %s122
      %p126 = pneg %p120
      %p127 = scmp.eq.s32.totalorder %s21, 7
      %p128 = por %p126, %p127
      %p129 = scmp.ne.s32.totalorder %s121, %s124
      %p130 = scmp.eq.s32.totalorder %s21, 0
      %p131 = por %p129, %p130
      %p132 = scmp.ne.s32.totalorder %s121, %s124
      %p133 = scmp.eq.s32.totalorder %s26, 7
      %p134 = por %p132, %p133
      %p135 = scmp.ne.s32.totalorder %s124, %s125
      %p136 = scmp.eq.s32.totalorder %s26, 0
      %p137 = por %p135, %p136
      %p138 = scmp.ne.s32.totalorder %s124, %s125
      %p139 = scmp.eq.s32.totalorder %s27, 7
      %p140 = por %p138, %p139
      %p142 = scmp.ne.s32.totalorder %s125, %s141
      %p143 = scmp.eq.s32.totalorder %s27, 0
      %p144 = por %p142, %p143
      %s145 = ssub.s32 %s29, %s36
      %p146 = scmp.eq.s32.totalorder %s145, 0
      %s148 = sadd.s32 %s147, 1
      %s149 = scalar_select %p146, %s147, %s148
      %p152 = pneg %p146
      %p153 = scmp.eq.s32.totalorder %s21, 7
      %p154 = por %p152, %p153
      %p155 = scmp.ne.s32.totalorder %s147, %s150
      %p156 = scmp.eq.s32.totalorder %s21, 0
      %p157 = por %p155, %p156
      %p158 = scmp.ne.s32.totalorder %s147, %s150
      %p159 = scmp.eq.s32.totalorder %s26, 7
      %p160 = por %p158, %p159
      %p161 = scmp.ne.s32.totalorder %s150, %s151
      %p162 = scmp.eq.s32.totalorder %s26, 0
      %p163 = por %p161, %p162
      %p164 = scmp.ne.s32.totalorder %s150, %s151
      %p165 = scmp.eq.s32.totalorder %s27, 7
      %p166 = por %p164, %p165
      %p168 = scmp.ne.s32.totalorder %s151, %s167
      %p169 = scmp.eq.s32.totalorder %s27, 0
      %p170 = por %p168, %p169
      %s171 = ssub.s32 %s29, %s36
      %p172 = scmp.eq.s32.totalorder %s171, 0
      %s174 = sadd.s32 %s173, 1
      %s175 = scalar_select %p172, %s173, %s174
      %p178 = pneg %p172
      %p179 = scmp.eq.s32.totalorder %s21, 7
      %p180 = por %p178, %p179
      %p181 = scmp.ne.s32.totalorder %s173, %s176
      %p182 = scmp.eq.s32.totalorder %s21, 0
      %p183 = por %p181, %p182
      %p184 = scmp.ne.s32.totalorder %s173, %s176
      %p185 = scmp.eq.s32.totalorder %s26, 7
      %p186 = por %p184, %p185
      %p187 = scmp.ne.s32.totalorder %s176, %s177
      %p188 = scmp.eq.s32.totalorder %s26, 0
      %p189 = por %p187, %p188
      %p190 = scmp.ne.s32.totalorder %s176, %s177
      %p191 = scmp.eq.s32.totalorder %s27, 7
      %p192 = por %p190, %p191
      %p194 = scmp.ne.s32.totalorder %s177, %s193
      %p195 = scmp.eq.s32.totalorder %s27, 0
      %p196 = por %p194, %p195
      %s197 = ssub.s32 %s29, %s36
      %p198 = scmp.eq.s32.totalorder %s197, 0
      %s200 = sadd.s32 %s199, 1
      %s201 = scalar_select %p198, %s199, %s200
      %p204 = pneg %p198
      %p205 = scmp.eq.s32.totalorder %s21, 7
      %p206 = por %p204, %p205
      %p207 = scmp.ne.s32.totalorder %s199, %s202
      %p208 = scmp.eq.s32.totalorder %s21, 0
      %p209 = por %p207, %p208
      %p210 = scmp.ne.s32.totalorder %s199, %s202
      %p211 = scmp.eq.s32.totalorder %s26, 7
      %p212 = por %p210, %p211
      %p213 = scmp.ne.s32.totalorder %s202, %s203
      %p214 = scmp.eq.s32.totalorder %s26, 0
      %p215 = por %p213, %p214
      %p216 = scmp.ne.s32.totalorder %s202, %s203
      %p217 = scmp.eq.s32.totalorder %s27, 7
      %p218 = por %p216, %p217
      %p220 = scmp.ne.s32.totalorder %s203, %s219
      %p221 = scmp.eq.s32.totalorder %s27, 0
      %p222 = por %p220, %p221
      %s223 = ssub.s32 %s29, %s36
      %p224 = scmp.eq.s32.totalorder %s223, 0
      %s226 = sadd.s32 %s225, 1
      %s227 = scalar_select %p224, %s225, %s226
      %p230 = pneg %p224
      %p231 = scmp.eq.s32.totalorder %s21, 7
      %p232 = por %p230, %p231
      %p233 = scmp.ne.s32.totalorder %s225, %s228
      %p234 = scmp.eq.s32.totalorder %s21, 0
      %p235 = por %p233, %p234
      %p236 = scmp.ne.s32.totalorder %s225, %s228
      %p237 = scmp.eq.s32.totalorder %s26, 7
      %p238 = por %p236, %p237
      %p239 = scmp.ne.s32.totalorder %s228, %s229
      %p240 = scmp.eq.s32.totalorder %s26, 0
      %p241 = por %p239, %p240
      %p242 = scmp.ne.s32.totalorder %s228, %s229
      %p243 = scmp.eq.s32.totalorder %s27, 7
      %p244 = por %p242, %p243
      %p246 = scmp.ne.s32.totalorder %s229, %s245
      %p247 = scmp.eq.s32.totalorder %s27, 0
      %p248 = por %p246, %p247
      %s249 = ssub.s32 %s29, %s36
      %p250 = scmp.eq.s32.totalorder %s249, 0
      %s252 = sadd.s32 %s251, 1
      %s253 = scalar_select %p250, %s251, %s252
      %p256 = pneg %p250
      %p257 = scmp.eq.s32.totalorder %s21, 7
      %p258 = por %p256, %p257
      %p259 = scmp.ne.s32.totalorder %s251, %s254
      %p260 = scmp.eq.s32.totalorder %s21, 0
      %p261 = por %p259, %p260
      %p262 = scmp.ne.s32.totalorder %s251, %s254
      %p263 = scmp.eq.s32.totalorder %s26, 7
      %p264 = por %p262, %p263
      %p265 = scmp.ne.s32.totalorder %s254, %s255
      %p266 = scmp.eq.s32.totalorder %s26, 0
      %p267 = por %p265, %p266
      %p268 = scmp.ne.s32.totalorder %s254, %s255
      %p269 = scmp.eq.s32.totalorder %s27, 7
      %p270 = por %p268, %p269
      %p272 = scmp.ne.s32.totalorder %s255, %s271
      %p273 = scmp.eq.s32.totalorder %s27, 0
      %p274 = por %p272, %p273
      %s276 = sadd.s32 %s275, 1
      %p279 = scmp.eq.s32.totalorder %s21, 7
      %p280 = scmp.ne.s32.totalorder %s275, %s277
      %p281 = scmp.eq.s32.totalorder %s21, 0
      %p282 = por %p280, %p281
      %p283 = scmp.ne.s32.totalorder %s275, %s277
      %p284 = scmp.eq.s32.totalorder %s26, 7
      %p285 = por %p283, %p284
      %p286 = scmp.ne.s32.totalorder %s277, %s278
      %p287 = scmp.eq.s32.totalorder %s26, 0
      %p288 = por %p286, %p287
      %p289 = scmp.ne.s32.totalorder %s277, %s278
      %p290 = scmp.eq.s32.totalorder %s27, 7
      %p291 = por %p289, %p290
      %p293 = scmp.ne.s32.totalorder %s278, %s292
      %p294 = scmp.eq.s32.totalorder %s27, 0
      %p295 = por %p293, %p294
      %s297 = sadd.s32 %s296, 1
      %p300 = scmp.eq.s32.totalorder %s21, 7
      %p301 = scmp.ne.s32.totalorder %s296, %s298
      %p302 = scmp.eq.s32.totalorder %s21, 0
      %p303 = por %p301, %p302
      %p304 = scmp.ne.s32.totalorder %s296, %s298
      %p305 = scmp.eq.s32.totalorder %s26, 7
      %p306 = por %p304, %p305
      %p307 = scmp.ne.s32.totalorder %s298, %s299
      %p308 = scmp.eq.s32.totalorder %s26, 0
      %p309 = por %p307, %p308
      %p310 = scmp.ne.s32.totalorder %s298, %s299
      %p311 = scmp.eq.s32.totalorder %s27, 7
      %p312 = por %p310, %p311
      %p314 = scmp.ne.s32.totalorder %s299, %s313
      %p315 = scmp.eq.s32.totalorder %s27, 0
      %p316 = por %p314, %p315
      %s318 = sadd.s32 %s317, 1
      %p321 = scmp.eq.s32.totalorder %s21, 7
      %p322 = scmp.ne.s32.totalorder %s317, %s319
      %p323 = scmp.eq.s32.totalorder %s21, 0
      %p324 = por %p322, %p323
      %p325 = scmp.ne.s32.totalorder %s317, %s319
      %p326 = scmp.eq.s32.totalorder %s26, 7
      %p327 = por %p325, %p326
      %p328 = scmp.ne.s32.totalorder %s319, %s320
      %p329 = scmp.eq.s32.totalorder %s26, 0
      %p330 = por %p328, %p329
      %p331 = scmp.ne.s32.totalorder %s319, %s320
      %p332 = scmp.eq.s32.totalorder %s27, 7
      %p333 = por %p331, %p332
      %p335 = scmp.ne.s32.totalorder %s320, %s334
      %p336 = scmp.eq.s32.totalorder %s27, 0
      %p337 = por %p335, %p336
      %s338 = ssub.s32 %s28, %s40
      %p339 = scmp.eq.s32.totalorder %s338, 0
      %s341 = sadd.s32 %s340, 1
      %s342 = scalar_select %p339, %s340, %s341
      %p345 = pneg %p339
      %p346 = scmp.eq.s32.totalorder %s21, 7
      %p347 = por %p345, %p346
      %p348 = scmp.ne.s32.totalorder %s340, %s343
      %p349 = scmp.eq.s32.totalorder %s21, 0
      %p350 = por %p348, %p349
      %p351 = scmp.ne.s32.totalorder %s340, %s343
      %p352 = scmp.eq.s32.totalorder %s26, 7
      %p353 = por %p351, %p352
      %p354 = scmp.ne.s32.totalorder %s343, %s344
      %p355 = scmp.eq.s32.totalorder %s26, 0
      %p356 = por %p354, %p355
      %p357 = scmp.ne.s32.totalorder %s343, %s344
      %p358 = scmp.eq.s32.totalorder %s27, 7
      %p359 = por %p357, %p358
      %p361 = scmp.ne.s32.totalorder %s344, %s360
      %p362 = scmp.eq.s32.totalorder %s27, 0
      %p363 = por %p361, %p362
      %p364 = scmp.le.s32.totalorder 1, %s21
      %p365 = scmp.lt.s32.totalorder %s21, 9
      %p366 = pnand %p364, %p365
      %p367 = pneg %p366
      // Predicated region
      $region9: #{tpu_custom_call.1} parent=5 // pred_check
        _
      $region10: #{tpu_custom_call.1} parent=5 // pred_check_branch
        %369 = sbr.rel (%p366) target = $region12
      $region11: #{tpu_custom_call.1} parent=5 // pred_region
        %s370 = ssub.s32 %s21, 1
        // Predicated region
        $region13: #{tpu_custom_call.1} parent=11 // pred_check
          %p371 = pneg %p288
        $region14: #{tpu_custom_call.1} parent=11 // pred_check_branch
          %373 = sbr.rel (%p371) target = $region16
        $region15: #{tpu_custom_call.1} parent=11 // pred_region
          _
        $region16: #{tpu_custom_call.1} parent=11 // pred_fallthru
          _
        // Predicated region
        $region17: #{tpu_custom_call.1} parent=11 // pred_check
          %p374 = pneg %p309
        $region18: #{tpu_custom_call.1} parent=11 // pred_check_branch
          %376 = sbr.rel (%p374) target = $region20
        $region19: #{tpu_custom_call.1} parent=11 // pred_region
          _
        $region20: #{tpu_custom_call.1} parent=11 // pred_fallthru
          _
        // Predicated region
        $region21: #{tpu_custom_call.1} parent=11 // pred_check
          %p377 = pneg %p330
        $region22: #{tpu_custom_call.1} parent=11 // pred_check_branch
          %379 = sbr.rel (%p377) target = $region24
        $region23: #{tpu_custom_call.1} parent=11 // pred_region
          _
        $region24: #{tpu_custom_call.1} parent=11 // pred_fallthru
          _
      $region12: #{tpu_custom_call.1} parent=5 // pred_fallthru
        _
      %p380 = scmp.lt.s32.totalorder %s21, 8
      // Predicated region
      $region25: #{tpu_custom_call.1} parent=5 // pred_check
        %p381 = pneg %p380
      $region26: #{tpu_custom_call.1} parent=5 // pred_check_branch
        %383 = sbr.rel (%p381) target = $region28
      $region27: #{tpu_custom_call.1} parent=5 // pred_region
        // Predicated region
        $region29: #{tpu_custom_call.1} parent=27 // pred_check
          %p384 = pneg %p53
        $region30: #{tpu_custom_call.1} parent=27 // pred_check_branch
          %386 = sbr.rel (%p384) target = $region32
        $region31: #{tpu_custom_call.1} parent=27 // pred_region
          %p387 = scmp.lt.s32.totalorder %s28, 1
          %s388 = scalar_select %p387, %s28, 1
          %s389 = smul.addr %s388, 8
          %s390 = scalar_lea.vmem %s0, %s389
        $region32: #{tpu_custom_call.1} parent=27 // pred_fallthru
          _
        // Predicated region
        $region33: #{tpu_custom_call.1} parent=27 // pred_check
          %p391 = pneg %p79
        $region34: #{tpu_custom_call.1} parent=27 // pred_check_branch
          %393 = sbr.rel (%p391) target = $region36
        $region35: #{tpu_custom_call.1} parent=27 // pred_region
          %p394 = scmp.lt.s32.totalorder %s28, 1
          %s395 = scalar_select %p394, %s28, 1
          %s396 = scalar_lea.vmem %s1, %s395
        $region36: #{tpu_custom_call.1} parent=27 // pred_fallthru
          _
        // Predicated region
        $region37: #{tpu_custom_call.1} parent=27 // pred_check
          %p397 = pneg %p105
        $region38: #{tpu_custom_call.1} parent=27 // pred_check_branch
          %399 = sbr.rel (%p397) target = $region40
        $region39: #{tpu_custom_call.1} parent=27 // pred_region
          %p400 = scmp.lt.s32.totalorder %s29, 3
          %s401 = scalar_select %p400, %s29, 3
          %s402 = smul.addr %s401, 4
          %s403 = smul.addr %s402, 4
          %s404 = scalar_lea.vmem %s2, %s403
        $region40: #{tpu_custom_call.1} parent=27 // pred_fallthru
          _
        // Predicated region
        $region41: #{tpu_custom_call.1} parent=27 // pred_check
          %p405 = pneg %p131
        $region42: #{tpu_custom_call.1} parent=27 // pred_check_branch
          %407 = sbr.rel (%p405) target = $region44
        $region43: #{tpu_custom_call.1} parent=27 // pred_region
          %p408 = scmp.lt.s32.totalorder %s29, 3
          %s409 = scalar_select %p408, %s29, 3
          %s410 = smul.addr %s409, 4
          %s411 = smul.addr %s410, 4
          %s412 = scalar_lea.vmem %s3, %s411
        $region44: #{tpu_custom_call.1} parent=27 // pred_fallthru
          _
        // Predicated region
        $region45: #{tpu_custom_call.1} parent=27 // pred_check
          %p413 = pneg %p157
        $region46: #{tpu_custom_call.1} parent=27 // pred_check_branch
          %415 = sbr.rel (%p413) target = $region48
        $region47: #{tpu_custom_call.1} parent=27 // pred_region
          %p416 = scmp.lt.s32.totalorder %s29, 3
          %s417 = scalar_select %p416, %s29, 3
          %s418 = smul.addr %s417, 4
          %s419 = smul.addr %s418, 4
          %s420 = scalar_lea.vmem %s4, %s419
        $region48: #{tpu_custom_call.1} parent=27 // pred_fallthru
          _
        // Predicated region
        $region49: #{tpu_custom_call.1} parent=27 // pred_check
          %p421 = pneg %p183
        $region50: #{tpu_custom_call.1} parent=27 // pred_check_branch
          %423 = sbr.rel (%p421) target = $region52
        $region51: #{tpu_custom_call.1} parent=27 // pred_region
          %p424 = scmp.lt.s32.totalorder %s29, 3
          %s425 = scalar_select %p424, %s29, 3
          %s426 = scalar_lea.vmem %s5, %s425
        $region52: #{tpu_custom_call.1} parent=27 // pred_fallthru
          _
        // Predicated region
        $region53: #{tpu_custom_call.1} parent=27 // pred_check
          %p427 = pneg %p209
        $region54: #{tpu_custom_call.1} parent=27 // pred_check_branch
          %429 = sbr.rel (%p427) target = $region56
        $region55: #{tpu_custom_call.1} parent=27 // pred_region
          %p430 = scmp.lt.s32.totalorder %s29, 3
          %s431 = scalar_select %p430, %s29, 3
          %s432 = scalar_lea.vmem %s6, %s431
        $region56: #{tpu_custom_call.1} parent=27 // pred_fallthru
          _
        // Predicated region
        $region57: #{tpu_custom_call.1} parent=27 // pred_check
          %p433 = pneg %p235
        $region58: #{tpu_custom_call.1} parent=27 // pred_check_branch
          %435 = sbr.rel (%p433) target = $region60
        $region59: #{tpu_custom_call.1} parent=27 // pred_region
          %p436 = scmp.lt.s32.totalorder %s29, 3
          %s437 = scalar_select %p436, %s29, 3
          %s438 = scalar_lea.vmem %s7, %s437
        $region60: #{tpu_custom_call.1} parent=27 // pred_fallthru
          _
        // Predicated region
        $region61: #{tpu_custom_call.1} parent=27 // pred_check
          %p439 = pneg %p261
        $region62: #{tpu_custom_call.1} parent=27 // pred_check_branch
          %441 = sbr.rel (%p439) target = $region64
        $region63: #{tpu_custom_call.1} parent=27 // pred_region
          %p442 = scmp.lt.s32.totalorder %s29, 3
          %s443 = scalar_select %p442, %s29, 3
          %s444 = smul.addr %s443, 4
          %s445 = scalar_lea.vmem %s8, %s444
        $region64: #{tpu_custom_call.1} parent=27 // pred_fallthru
          _
      $region28: #{tpu_custom_call.1} parent=5 // pred_fallthru
        _
      %p446 = scmp.le.s32.totalorder 1, %s21
      %p447 = scmp.lt.s32.totalorder %s21, 9
      %p448 = pnand %p446, %p447
      %p449 = pneg %p448
      // Predicated region
      $region65: #{tpu_custom_call.1} parent=5 // pred_check
        _
      $region66: #{tpu_custom_call.1} parent=5 // pred_check_branch
        %451 = sbr.rel (%p448) target = $region68
      $region67: #{tpu_custom_call.1} parent=5 // pred_region
        %s452 = ssub.s32 %s21, 1
        %p453 = scmp.lt.s32.totalorder %s30, 1
        %s454 = scalar_select %p453, %s30, 1
        %s455 = smul.addr %s454, 8
        %s456 = scalar_lea.vmem %s0, %s455
        %p457 = pneg %p59
        %p458 = pneg %p56
        %p459 = scmp.lt.s32.totalorder %s30, 1
        %s460 = scalar_select %p459, %s30, 1
        %s461 = scalar_lea.vmem %s1, %s460
        %p462 = pneg %p85
        %p463 = pneg %p82
        %p464 = scmp.lt.s32.totalorder %s31, 3
        %s465 = scalar_select %p464, %s31, 3
        %s466 = smul.addr %s465, 4
        %s467 = smul.addr %s466, 4
        %s468 = scalar_lea.vmem %s2, %s467
        %p469 = pneg %p111
        %p470 = pneg %p108
        %p471 = scmp.lt.s32.totalorder %s31, 3
        %s472 = scalar_select %p471, %s31, 3
        %s473 = smul.addr %s472, 4
        %s474 = smul.addr %s473, 4
        %s475 = scalar_lea.vmem %s3, %s474
        %p476 = pneg %p137
        %p477 = pneg %p134
        %p478 = scmp.lt.s32.totalorder %s31, 3
        %s479 = scalar_select %p478, %s31, 3
        %s480 = smul.addr %s479, 4
        %s481 = smul.addr %s480, 4
        %s482 = scalar_lea.vmem %s4, %s481
        %p483 = pneg %p163
        %p484 = pneg %p160
        %p485 = scmp.lt.s32.totalorder %s31, 3
        %s486 = scalar_select %p485, %s31, 3
        %s487 = scalar_lea.vmem %s5, %s486
        %p488 = pneg %p189
        %p489 = pneg %p186
        %p490 = scmp.lt.s32.totalorder %s31, 3
        %s491 = scalar_select %p490, %s31, 3
        %s492 = scalar_lea.vmem %s6, %s491
        %p493 = pneg %p215
        %p494 = pneg %p212
        %p495 = scmp.lt.s32.totalorder %s31, 3
        %s496 = scalar_select %p495, %s31, 3
        %s497 = scalar_lea.vmem %s7, %s496
        %p498 = pneg %p241
        %p499 = pneg %p238
        %p500 = scmp.lt.s32.totalorder %s31, 3
        %s501 = scalar_select %p500, %s31, 3
        %s502 = smul.addr %s501, 4
        %s503 = scalar_lea.vmem %s8, %s502
        %p504 = pneg %p267
        %p505 = pneg %p264
        %p506 = pneg %p288
        %p507 = pneg %p285
        %p508 = pneg %p309
        %p509 = pneg %p306
        %p510 = pneg %p330
        %p511 = pneg %p327
        %p512 = pneg %p356
        %p513 = pneg %p353
        %s514 = sand.u32 %s343, 1
        %s515 = scalar_lea.sflag [#allocation4], %s514
        %s516 = sand.u32 %s343, 1
        %s517 = smul.addr %s516, 8
        %s518 = scalar_lea.vmem [#allocation3], %s517
        %p519 = scmp.lt.s32.totalorder %s30, 1
        %s520 = scalar_select %p519, %s30, 1
        %s521 = smul.addr %s520, 8
        %s522 = scalar_lea.vmem %s0, %s521
        %p523 = scmp.lt.s32.totalorder %s30, 1
        %s524 = scalar_select %p523, %s30, 1
        %s525 = scalar_lea.vmem %s1, %s524
        %p526 = scmp.lt.s32.totalorder %s31, 3
        %s527 = scalar_select %p526, %s31, 3
        %s528 = smul.addr %s527, 4
        %s529 = smul.addr %s528, 4
        %s530 = scalar_lea.vmem %s2, %s529
        %p531 = scmp.lt.s32.totalorder %s31, 3
        %s532 = scalar_select %p531, %s31, 3
        %s533 = smul.addr %s532, 4
        %s534 = smul.addr %s533, 4
        %s535 = scalar_lea.vmem %s3, %s534
        %p536 = scmp.lt.s32.totalorder %s31, 3
        %s537 = scalar_select %p536, %s31, 3
        %s538 = smul.addr %s537, 4
        %s539 = smul.addr %s538, 4
        %s540 = scalar_lea.vmem %s4, %s539
        %p541 = scmp.lt.s32.totalorder %s31, 3
        %s542 = scalar_select %p541, %s31, 3
        %s543 = scalar_lea.vmem %s5, %s542
        %p544 = scmp.lt.s32.totalorder %s31, 3
        %s545 = scalar_select %p544, %s31, 3
        %s546 = scalar_lea.vmem %s6, %s545
        %p547 = scmp.lt.s32.totalorder %s31, 3
        %s548 = scalar_select %p547, %s31, 3
        %s549 = scalar_lea.vmem %s7, %s548
        %p550 = scmp.lt.s32.totalorder %s31, 3
        %s551 = scalar_select %p550, %s31, 3
        %s552 = smul.addr %s551, 4
        %s553 = scalar_lea.vmem %s8, %s552
        %v555 = vld [vmem:[%s522] sm:$0xff]
        %v556 = vpack.c.bf16 %v555, %v555
        %v557 = vld [vmem:[%s530] sm:$0xf]
        %v558 = vld [vmem:[%s530 + $0x4] sm:$0xf]
        %v559 = vld [vmem:[%s530 + $0x8] sm:$0xf]
        %v560 = vld [vmem:[%s530 + $0xc] sm:$0xf]
        %v561 = vld [vmem:[%s543] sm:$0x1]
        %v563 = vperm.slane %v561, 0
        %v569 = vunpack.c.l.b16 %v557
        %v570 = vunpack.c.l.b16 %v558
        %v571 = vunpack.c.l.b16 %v559
        %v572 = vunpack.c.l.b16 %v560
        %v573 = vpack.c.b16 %v570, %v569
        %v574 = vpack.c.b16 %v572, %v571
        %vm577 = vcmask 261120
        %v579 = vsel %vm577, %v556, 0
        %581 = vmatpush.bf16.msra.mxu0 0
        %582 = vmatpush.bf16.msra.mxu0 0
        %583 = vmatpush.bf16.msra.mxu0 0
        %584 = vmatpush.bf16.msra.mxu0 0
        %585 = vmatpush.bf16.msra.mxu0 0
        %586 = vmatpush.bf16.msra.mxu0 0
        %587 = vmatpush.bf16.msra.mxu0 %v574
        %588 = vmatpush.bf16.msra.mxu0 %v573
        %589 = vmatmul.bf16.gmra.mxu0 %v579
        %v590 = vpop.f32.mrf.mxu0
        %v591 = vadd.f32 %v563, %v590
        %v592 = vpop.f32.mrf.mxu0
        %593 = vdwg.mxu0
        %v594 = vld [vmem:[%s535] sm:$0xf]
        %v595 = vld [vmem:[%s535 + $0x4] sm:$0xf]
        %v596 = vld [vmem:[%s535 + $0x8] sm:$0xf]
        %v597 = vld [vmem:[%s535 + $0xc] sm:$0xf]
        %v598 = vld [vmem:[%s546] sm:$0x1]
        %v600 = vperm.slane %v598, 0
        %v606 = vunpack.c.l.b16 %v594
        %v607 = vunpack.c.l.b16 %v595
        %v608 = vunpack.c.l.b16 %v596
        %v609 = vunpack.c.l.b16 %v597
        %v610 = vpack.c.b16 %v607, %v606
        %v611 = vpack.c.b16 %v609, %v608
        %614 = vmatpush.bf16.msra.mxu0 0
        %615 = vmatpush.bf16.msra.mxu0 0
        %616 = vmatpush.bf16.msra.mxu0 0
        %617 = vmatpush.bf16.msra.mxu0 0
        %618 = vmatpush.bf16.msra.mxu0 0
        %619 = vmatpush.bf16.msra.mxu0 0
        %620 = vmatpush.bf16.msra.mxu0 %v611
        %621 = vmatpush.bf16.msra.mxu0 %v610
        %622 = vmatmul.bf16.gmra.mxu0 %v579
        %v623 = vpop.f32.mrf.mxu0
        %v624 = vadd.f32 %v600, %v623
        %v625 = vpop.f32.mrf.mxu0
        %626 = vdwg.mxu0
        %v627 = vld [vmem:[%s540] sm:$0xf]
        %v628 = vld [vmem:[%s540 + $0x4] sm:$0xf]
        %v629 = vld [vmem:[%s540 + $0x8] sm:$0xf]
        %v630 = vld [vmem:[%s540 + $0xc] sm:$0xf]
        %v631 = vld [vmem:[%s549] sm:$0x1]
        %v633 = vperm.slane %v631, 0
        %v639 = vunpack.c.l.b16 %v627
        %v640 = vunpack.c.l.b16 %v628
        %v641 = vunpack.c.l.b16 %v629
        %v642 = vunpack.c.l.b16 %v630
        %v643 = vpack.c.b16 %v640, %v639
        %v644 = vpack.c.b16 %v642, %v641
        %647 = vmatpush.bf16.msra.mxu0 0
        %648 = vmatpush.bf16.msra.mxu0 0
        %649 = vmatpush.bf16.msra.mxu0 0
        %650 = vmatpush.bf16.msra.mxu0 0
        %651 = vmatpush.bf16.msra.mxu0 0
        %652 = vmatpush.bf16.msra.mxu0 0
        %653 = vmatpush.bf16.msra.mxu0 %v644
        %654 = vmatpush.bf16.msra.mxu0 %v643
        %655 = vmatmul.bf16.gmra.mxu0 %v579
        %v656 = vpop.f32.mrf.mxu0
        %v657 = vadd.f32 %v633, %v656
        %v658 = vpop.f32.mrf.mxu0
        %659 = vdwg.mxu0
        %v660 = vpack.c.bf16 %v591, %v591
        %v661 = vpack.c.bf16 %v624, %v624
        %v662 = vld [vmem:[%s525] sm:$0x1]
        %v664 = vperm.slane %v662, 0
        %vm666 = vcmask 64512
        %v668 = vsel %vm666, %v660, 0
        %v671 = vsel %vm666, %v661, 0
        %673 = vmatpush.bf16.xpose.msra.mxu0 0
        %674 = vmatpush.bf16.xpose.msra.mxu0 0
        %675 = vmatpush.bf16.xpose.msra.mxu0 0
        %676 = vmatpush.bf16.xpose.msra.mxu0 0
        %677 = vmatpush.bf16.xpose.msra.mxu0 0
        %678 = vmatpush.bf16.xpose.msra.mxu0 0
        %679 = vmatpush.bf16.xpose.msra.mxu0 0
        %680 = vmatpush.bf16.xpose.msra.mxu0 %v671
        %681 = vmatmul.bf16.gmra.mxu0 %v668
        %v682 = vpop.f32.mrf.mxu0
        %v683 = vadd.f32 %v664, %v682
        %v684 = vpop.f32.mrf.mxu0
        %685 = vdwg.mxu0
        %v686 = vsel %vm666, %v683, -inf
        %687 = vmax.xlane.f32.xlu0 %v686
        %v688 = vpop.xlane.xlu0 %687
        %v689 = vsub.f32 %v683, %v688
        %v690 = vmul.f32 %v689, 1.442695
        %v691 = vpow.pop %v690
        %v692 = vsel %vm666, %v691, 0.0
        %693 = vadd.xlane.f32.xlu0 %v692
        %v694 = vpop.xlane.xlu0 %693
        %v695 = vrcp.pop %v694
        %v696 = vmul.f32 %v691, %v695
        %v697 = vpack.c.bf16 %v696, %v696
        %v698 = vpack.c.bf16 %v657, %v657
        %v700 = vsel %vm666, %v697, 0
        %vm702 = vcmask 1043456
        %v704 = vsel %vm702, %v698, 0
        %706 = vmatpush.bf16.msra.mxu0 0
        %707 = vmatpush.bf16.msra.mxu0 0
        %708 = vmatpush.bf16.msra.mxu0 0
        %709 = vmatpush.bf16.msra.mxu0 0
        %710 = vmatpush.bf16.msra.mxu0 0
        %711 = vmatpush.bf16.msra.mxu0 0
        %712 = vmatpush.bf16.msra.mxu0 0
        %713 = vmatpush.bf16.msra.mxu0 %v704
        %714 = vmatmul.bf16.gmra.mxu0 %v700
        %v715 = vpop.f32.mrf.mxu0
        %v716 = vadd.f32 0.0, %v715
        %v717 = vpop.f32.mrf.mxu0
        %718 = vdwg.mxu0
        %v719 = vpack.c.bf16 %v716, %v716
        %v720 = vld [vmem:[%s553] sm:$0xf]
        %v722 = vsel %vm666, %v719, 0
        %v725 = vsel %vm702, %v720, 0
        %727 = vmatpush.bf16.msra.mxu0 0
        %728 = vmatpush.bf16.msra.mxu0 0
        %729 = vmatpush.bf16.msra.mxu0 0
        %730 = vmatpush.bf16.msra.mxu0 0
        %731 = vmatpush.bf16.msra.mxu0 0
        %732 = vmatpush.bf16.msra.mxu0 0
        %733 = vmatpush.bf16.msra.mxu0 0
        %734 = vmatpush.bf16.msra.mxu0 %v725
        %735 = vmatmul.bf16.gmra.mxu0 %v722
        %v736 = vpop.f32.mrf.mxu0
        %v737 = vadd.f32 0.0, %v736
        %v738 = vpop.f32.mrf.mxu0
        %739 = vdwg.mxu0
        %p740 = scmp.eq.s32.totalorder %s31, 0
        // Predicated region
        $region69: #{tpu_custom_call.1} parent=67 // pred_check
          %p741 = pneg %p740
        $region70: #{tpu_custom_call.1} parent=67 // pred_check_branch
          %743 = sbr.rel (%p741) target = $region72
        $region71: #{tpu_custom_call.1} parent=67 // pred_region
          %744 = vst.msk [vmem:[#allocation2] sm:$0xff] %vm577, 0.0
        $region72: #{tpu_custom_call.1} parent=67 // pred_fallthru
          _
        %v745 = vld [vmem:[#allocation2] sm:$0xff]
        %v746 = vadd.f32 %v745, %v737
        %747 = vst.msk [vmem:[#allocation2] sm:$0xff] %vm577, %v746
        %p748 = scmp.eq.s32.totalorder %s31, 3
        // Predicated region
        $region73: #{tpu_custom_call.1} parent=67 // pred_check
          %p749 = pneg %p748
        $region74: #{tpu_custom_call.1} parent=67 // pred_check_branch
          %751 = sbr.rel (%p749) target = $region76
        $region75: #{tpu_custom_call.1} parent=67 // pred_region
          %v752 = vld [vmem:[#allocation2] sm:$0xff]
          %v753 = vld [vmem:[%s9] sm:$0x1]
          %v755 = vperm.slane %v753, 0
          %v757 = vadd.f32 %v752, %v755
          %v758 = vadd.f32 %v757, %v555
          %v759 = vld [vmem:[%s10] sm:$0x1]
          %v760 = vld [vmem:[%s11] sm:$0x1]
          %v761 = vsel %vm577, %v758, 0.0
          %762 = vadd.xlane.f32.xlu0 %v761
          %v763 = vpop.xlane.xlu0 %762
          %v764 = vrcp.pop 32.0
          %v765 = vmul.f32 32.0, %v764
          %v766 = vsub.f32 1.0, %v765
          %v767 = vmul.f32 %v764, %v766
          %v768 = vadd.f32 %v764, %v767
          %vm769 = vweird.f32 %v764
          %v770 = vsel %vm769, %v764, %v768
          %v771 = vmul.f32 %v763, %v770
          %v772 = vsub.f32 %v758, %v771
          %v773 = vmul.f32 %v772, %v772
          %v774 = vsel %vm577, %v773, 0.0
          %775 = vadd.xlane.f32.xlu0 %v774
          %v776 = vpop.xlane.xlu0 %775
          %v777 = vmul.f32 %v776, %v770
          %v778 = vadd.f32 %v777, 1e-12
          %v779 = vrsqrt.pop %v778
          %v780 = vmul.f32 %v779, %v778
          %v781 = vmul.f32 %v780, %v779
          %v782 = vmul.f32 0.5, %v781
          %v783 = vsub.f32 1.5, %v782
          %v784 = vmul.f32 %v779, %v783
          %vm785 = vweird.f32 %v778
          %vm786 = vweird.f32 %v779
          %vm787 = vmor %vm785, %vm786
          %v788 = vsel %vm787, %v779, %v784
          %v789 = vmul.f32 %v772, %v788
          %v791 = vperm.slane %v759, 0
          %v793 = vmul.f32 %v789, %v791
          %v795 = vperm.slane %v760, 0
          %v797 = vadd.f32 %v793, %v795
          %798 = vst.msk [vmem:[%s518] sm:$0xff] %vm577, %v797
        $region76: #{tpu_custom_call.1} parent=67 // pred_fallthru
          _
        %s799 = sand.u32 %s343, 1
        %s800 = scalar_lea.sflag [#allocation4], %s799
        %s801 = sand.u32 %s343, 1
        %s802 = smul.addr %s801, 8
        %s803 = scalar_lea.vmem [#allocation3], %s802
        // Predicated region
        $region77: #{tpu_custom_call.1} parent=67 // pred_check
          %p804 = pneg %p353
        $region78: #{tpu_custom_call.1} parent=67 // pred_check_branch
          %806 = sbr.rel (%p804) target = $region80
        $region79: #{tpu_custom_call.1} parent=67 // pred_region
          %808 = vsyncadd %s800, 0
          %s809 = smul.addr %s30, 8
          %s810 = scalar_lea.hbm %s12, %s809
          %s812 = sshll.u32 %s803, 4
          %s813 = int_to_ptr.vmem [resolvable:$true] %s812
          %s814 = sshll.u32 %s810, 4
          %s815 = int_to_ptr.hbm [resolvable:$true] %s814
          %817 = dma.vmem_to_hbm [thread:$0]  %s813, 128, %s815, %s800
        $region80: #{tpu_custom_call.1} parent=67 // pred_fallthru
          _
      $region68: #{tpu_custom_call.1} parent=5 // pred_fallthru
        _
      %p818 = scmp.le.s32.totalorder 2, %s21
      // Predicated region
      $region81: #{tpu_custom_call.1} parent=5 // pred_check
        %p819 = pneg %p818
      $region82: #{tpu_custom_call.1} parent=5 // pred_check_branch
        %821 = sbr.rel (%p819) target = $region84
      $region83: #{tpu_custom_call.1} parent=5 // pred_region
        %s822 = ssub.s32 %s21, 2
        // Predicated region
        $region85: #{tpu_custom_call.1} parent=83 // pred_check
          %p823 = pneg %p359
        $region86: #{tpu_custom_call.1} parent=83 // pred_check_branch
          %825 = sbr.rel (%p823) target = $region88
        $region87: #{tpu_custom_call.1} parent=83 // pred_region
          %s826 = sand.u32 %s344, 1
          %s827 = scalar_lea.sflag [#allocation4], %s826
          %s828 = sand.u32 %s344, 1
          %s829 = smul.addr %s828, 8
          %s830 = scalar_lea.vmem [#allocation3], %s829
          %832 = dma.done %s827, 128
        $region88: #{tpu_custom_call.1} parent=83 // pred_fallthru
          _
      $region84: #{tpu_custom_call.1} parent=5 // pred_fallthru
        _
    $region6: #{tpu_custom_call.1} parent=1 // loop_footer
      %s25 = sadd.s32 1, %s21
    $region7: #{tpu_custom_call.1} parent=1 // loop_footer_branch
      %20 = sbr.rel target = $region3
    $region8: #{tpu_custom_call.1} parent=1 // loop_exit
      _
    %833 = vsyncpa [#allocation4], 1
    %s834 = scalar_lea.sflag [#allocation4], 1
    %835 = vsyncpa %s834, 1

</llo_original>
